<compile_context>
chip_gen: v7x
topology: tpu7x:2x2x1
jax: 0.10.0
libtpu: 0.0.40
codegen_flags: <defaults>
</compile_context>

<pallas_src>
import functools

import jax
import jax.numpy as jnp
from jax.experimental import pallas as pl
from jax.experimental.pallas import tpu as pltpu


def _deconv_bn_relu_kernel(w_ref, b_ref, e_ref, x_ref, o_ref, *, hw, tm):
    # w_ref: (kW=2, tk2, Cin) bf16, BN scale folded            [resident]
    # b_ref: (tk2, 1)         f32, folded BN bias              [resident]
    # e_ref: (2, tm, 2*tm)    bf16, riffle scatter matrices    [resident]
    # x_ref: (Cin, tm)        f32, streamed input columns
    # o_ref: (tk2, 2*tm)      bf16, lane order (..., hw, kW)
    x = x_ref[...].astype(jnp.bfloat16)
    y0 = jnp.dot(w_ref[0], x, preferred_element_type=jnp.float32)   # b = 0
    y1 = jnp.dot(w_ref[1], x, preferred_element_type=jnp.float32)   # b = 1
    bias = b_ref[...]
    y0 = jnp.maximum(y0 + bias, 0.0)
    y1 = jnp.maximum(y1 + bias, 0.0)

    # Zero columns beyond the true spatial extent (partial last HW tile).  Needed
    # because the riffle matmul below mixes columns and 0 * inf/nan would poison
    # valid lanes; on full tiles this is an all-true select (cheap VPU).
    valid = hw - pl.program_id(2) * tm
    col = jax.lax.broadcasted_iota(jnp.int32, y0.shape, 1)
    keep = col < valid
    y0 = jnp.where(keep, y0, 0.0).astype(jnp.bfloat16)
    y1 = jnp.where(keep, y1, 0.0).astype(jnp.bfloat16)

    # Exact riffle via 0/1 scatter matrices: out[:, 2m] = y0[:, m], out[:, 2m+1] = y1[:, m].
    out = jnp.dot(y0, e_ref[0], preferred_element_type=jnp.float32)
    out = out + jnp.dot(y1, e_ref[1], preferred_element_type=jnp.float32)
    o_ref[...] = out.astype(o_ref.dtype)


def _pick_tm(hw, n_batch, tm_max=512):
    """Spatial (lane) tile.  Full extent when small (exact, no masking); otherwise a
    multiple of 128, shrunk while keeping >= ~8 grid steps for pipelining/megacore."""
    if hw <= tm_max:
        return hw
    tm = tm_max
    while tm > 128 and n_batch * ((hw + tm - 1) // tm) < 8:
        tm //= 2
    return tm


def _pick_tk(r2, tk_max=1024):
    """Tile the GEMM row dim (Cout*kH) only when it is large (v7x VMEM budget)."""
    if r2 <= tk_max:
        return r2
    tk = tk_max
    while tk > 8:
        if r2 % tk == 0 and tk % 8 == 0:
            return tk
        tk //= 2
    return r2


def _vmem_limit_bytes(cin, tk2, tm):
    cin_p = max(cin, 8)
    w = 2 * (2 * tk2 * cin_p * 2)          # bf16 weight, double-buffered
    b = 2 * (tk2 * 128 * 4)                # lane-padded f32 bias
    e = 2 * (2 * tm * 2 * tm * 2)          # bf16 riffle matrices
    x = 2 * (cin_p * tm * 4)               # f32 input stream
    o = 2 * (tk2 * 2 * tm * 2)             # bf16 output stream
    tmp = 2 * (tk2 * tm * 4) + 2 * (tk2 * 2 * tm * 4)   # f32 intermediates
    need = w + b + e + x + o + tmp
    return int(min(56 * 2 ** 20, max(32 * 2 ** 20, 3 * need // 2)))


@jax.jit
def trans_basic_conv2d(x_nchw, weight, gamma, beta, running_mean, running_var,
                       eps=1e-5):
    """x_nchw: (N, Cin, H, W). weight: (Cin, Cout, 2, 2) (PyTorch ConvTranspose2d).
    Returns (N, Cout, 2H, 2W) float32 (NCHW), matching the PyTorch module."""
    N, Cin, H, W = x_nchw.shape
    Cin_w, Cout, kH, kW = weight.shape
    assert Cin == Cin_w and kH == 2 and kW == 2
    R2 = Cout * kH                  # rows of the flipped GEMM (kW handled separately)
    HW = H * W

    # ---- fold inference BatchNorm into per-output-channel scale / bias ----
    inv_std = jax.lax.rsqrt(running_var.astype(jnp.float32) + eps)
    scale_c = gamma.astype(jnp.float32) * inv_std                      # (Cout,)
    bias_c = beta.astype(jnp.float32) - running_mean.astype(jnp.float32) * scale_c

    # ---- weights: fold scale, reorder to (kW, Cout*kH, Cin), cast to bf16 ----
    w = weight.astype(jnp.float32) * scale_c[None, :, None, None]      # (Cin,Cout,kH,kW)
    w = jnp.transpose(w, (3, 1, 2, 0)).reshape(kW, R2, Cin).astype(jnp.bfloat16)
    bias2 = jnp.repeat(bias_c, kH).reshape(R2, 1)                      # (R2, 1) f32

    # ---- input: free reshape only; the kernel does the bf16 cast ----
    x3 = x_nchw.reshape(N, Cin, HW)

    tm = _pick_tm(HW, N)
    mt = (HW + tm - 1) // tm
    tk2 = _pick_tk(R2)
    kt = R2 // tk2

    # ---- riffle scatter matrices: e[0][m, 2m] = 1, e[1][m, 2m+1] = 1 ----
    m_idx = jnp.arange(tm, dtype=jnp.int32)[:, None]
    l_idx = jnp.arange(2 * tm, dtype=jnp.int32)[None, :]
    e = jnp.stack([(l_idx == 2 * m_idx), (l_idx == 2 * m_idx + 1)])
    e = e.astype(jnp.bfloat16)                                         # (2, tm, 2tm)

    kernel = functools.partial(_deconv_bn_relu_kernel, hw=HW, tm=tm)

    flops = 4 * N * HW * Cin * R2 + 8 * N * mt * R2 * tm * tm
    bytes_acc = (4 * N * Cin * HW + 2 * kW * R2 * Cin + 4 * R2
                 + 2 * 2 * tm * 2 * tm + 2 * N * R2 * 2 * HW)
    cost = pl.CostEstimate(flops=int(flops), transcendentals=0,
                           bytes_accessed=int(bytes_acc))

    y = pl.pallas_call(
        kernel,
        out_shape=jax.ShapeDtypeStruct((N, R2, 2 * HW), jnp.bfloat16),
        grid_spec=pltpu.PrefetchScalarGridSpec(
            num_scalar_prefetch=0,
            grid=(N, kt, mt),
            in_specs=[
                pl.BlockSpec((kW, tk2, Cin), lambda n, k, m: (0, k, 0)),   # weight
                pl.BlockSpec((tk2, 1), lambda n, k, m: (k, 0)),            # bias
                pl.BlockSpec((2, tm, 2 * tm), lambda n, k, m: (0, 0, 0)),  # riffle E
                pl.BlockSpec((None, Cin, tm), lambda n, k, m: (n, 0, m)),  # input
            ],
            out_specs=pl.BlockSpec((None, tk2, 2 * tm), lambda n, k, m: (n, k, m)),
        ),
        compiler_params=pltpu.CompilerParams(
            dimension_semantics=("parallel", "parallel", "arbitrary"),
            vmem_limit_bytes=_vmem_limit_bytes(Cin, tk2, tm),
        ),
        cost_estimate=cost,
    )(w, bias2, e, x3)

    # Remaining layout fix is a pure major-dim transpose (contiguous W*kW chunks)
    # fused with the single f32 cast:
    # (N, Cout, kH, H, W*kW) -> (N, Cout, H, kH, W*kW) -> (N, Cout, 2H, 2W)
    y = y.reshape(N, Cout, kH, H, W * kW)
    y = jnp.transpose(y, (0, 1, 3, 2, 4)).astype(jnp.float32)
    return y.reshape(N, Cout, H * kH, W * kW)


def _reference(x_nchw, weight, gamma, beta, running_mean, running_var, eps=1e-5):
    """Pure-JAX f32 reference (same math, no Pallas)."""
    N, Cin, H, W = x_nchw.shape
    _, Cout, kH, kW = weight.shape
    y = jnp.einsum("nchw,coab->nohawb", x_nchw, weight)
    y = y.reshape(N, Cout, H * kH, W * kW)
    inv_std = 1.0 / jnp.sqrt(running_var + eps)
    y = (y - running_mean[None, :, None, None]) * (gamma * inv_std)[None, :, None, None] \
        + beta[None, :, None, None]
    return jnp.maximum(y, 0.0)


if __name__ == "__main__":
    key = jax.random.PRNGKey(0)
    k1, k2, k3, k4, k5, k6 = jax.random.split(key, 6)

    N, Cin, H, W = 2, 4, 16, 16
    Cout = 8

    x = jax.random.normal(k1, (N, Cin, H, W), dtype=jnp.float32)
    weight = jax.random.normal(k2, (Cin, Cout, 2, 2), dtype=jnp.float32) * 0.1
    gamma = 1.0 + 0.1 * jax.random.normal(k3, (Cout,), dtype=jnp.float32)
    beta = 0.1 * jax.random.normal(k4, (Cout,), dtype=jnp.float32)
    running_mean = 0.1 * jax.random.normal(k5, (Cout,), dtype=jnp.float32)
    running_var = jnp.abs(1.0 + 0.1 * jax.random.normal(k6, (Cout,), dtype=jnp.float32))

    out = trans_basic_conv2d(x, weight, gamma, beta, running_mean, running_var)
    out = jax.block_until_ready(out)

    ref = _reference(x, weight, gamma, beta, running_mean, running_var)
    assert out.shape == (N, Cout, 2 * H, 2 * W), out.shape
    # bf16 MXU inputs / bf16 kernel output with f32 accumulation -> loosened tolerance.
    assert jnp.allclose(out, ref, atol=2e-2, rtol=2e-2), \
        float(jnp.max(jnp.abs(out - ref)))

    print("KERNEL_OK")
</pallas_src>

<mosaic_0001>
module attributes {stable_mosaic.version = 11 : i64} {
  func.func @_deconv_bn_relu_kernel(%arg0: i32, %arg1: i32, %arg2: i32, %arg3: memref<2x16x4xbf16, #tpu.memory_space<vmem>>, %arg4: memref<16x1xf32, #tpu.memory_space<vmem>>, %arg5: memref<2x256x512xbf16, #tpu.memory_space<vmem>>, %arg6: memref<1x4x256xf32, #tpu.memory_space<vmem>>, %arg7: memref<1x16x512xbf16, #tpu.memory_space<vmem>>) attributes {dimension_semantics = [#tpu.dimension_semantics<parallel>, #tpu.dimension_semantics<parallel>, #tpu.dimension_semantics<arbitrary>], iteration_bounds = array<i64: 2, 1, 1>, scalar_prefetch = 0 : i64, scratch_operands = 0 : i64, tpu.core_type = #tpu.core_type<tc>, window_params = [{transform_indices = @transform_0, window_bounds = array<i64: 2, 16, 4>}, {transform_indices = @transform_1, window_bounds = array<i64: 16, 1>}, {pipeline_mode = #tpu.pipeline_mode<synchronous>, transform_indices = @transform_2, window_bounds = array<i64: 2, 256, 512>}, {transform_indices = @transform_3, window_bounds = array<i64: 1, 4, 256>}, {transform_indices = @transform_4, window_bounds = array<i64: 1, 16, 512>}]} {
    %c0 = arith.constant 0 : index
    %c0_0 = arith.constant 0 : index
    %c0_1 = arith.constant 0 : index
    %0 = vector.load %arg6[%c0, %c0_0, %c0_1] : memref<1x4x256xf32, #tpu.memory_space<vmem>>, vector<1x4x256xf32>
    %1 = vector.shape_cast %0 : vector<1x4x256xf32> to vector<4x256xf32>
    %2 = arith.truncf %1 : vector<4x256xf32> to vector<4x256xbf16>
    %c0_2 = arith.constant 0 : index
    %c0_3 = arith.constant 0 : index
    %c0_4 = arith.constant 0 : index
    %3 = vector.load %arg3[%c0_2, %c0_3, %c0_4] : memref<2x16x4xbf16, #tpu.memory_space<vmem>>, vector<1x16x4xbf16>
    %4 = vector.shape_cast %3 : vector<1x16x4xbf16> to vector<16x4xbf16>
    %cst = arith.constant dense<0.000000e+00> : vector<16x256xf32>
    %5 = tpu.matmul %4, %2, %cst {dimension_numbers = #tpu.dot_dimension_numbers<[1], [0], [0], [1], [0, 0, 1, 1], [], []>} : vector<16x4xbf16>, vector<4x256xbf16>, vector<16x256xf32> -> vector<16x256xf32>
    %c1 = arith.constant 1 : index
    %c0_5 = arith.constant 0 : index
    %c0_6 = arith.constant 0 : index
    %6 = vector.load %arg3[%c1, %c0_5, %c0_6] : memref<2x16x4xbf16, #tpu.memory_space<vmem>>, vector<1x16x4xbf16>
    %7 = vector.shape_cast %6 : vector<1x16x4xbf16> to vector<16x4xbf16>
    %cst_7 = arith.constant dense<0.000000e+00> : vector<16x256xf32>
    %8 = tpu.matmul %7, %2, %cst_7 {dimension_numbers = #tpu.dot_dimension_numbers<[1], [0], [0], [1], [0, 0, 1, 1], [], []>} : vector<16x4xbf16>, vector<4x256xbf16>, vector<16x256xf32> -> vector<16x256xf32>
    %c0_8 = arith.constant 0 : index
    %c0_9 = arith.constant 0 : index
    %9 = vector.load %arg4[%c0_8, %c0_9] : memref<16x1xf32, #tpu.memory_space<vmem>>, vector<16x1xf32>
    %10 = vector.broadcast %9 : vector<16x1xf32> to vector<16x256xf32>
    %11 = arith.addf %5, %10 : vector<16x256xf32>
    %cst_10 = arith.constant 0.000000e+00 : f32
    %12 = vector.broadcast %cst_10 : f32 to vector<16x256xf32>
    %13 = arith.maximumf %11, %12 : vector<16x256xf32>
    %14 = vector.broadcast %9 : vector<16x1xf32> to vector<16x256xf32>
    %15 = arith.addf %8, %14 : vector<16x256xf32>
    %cst_11 = arith.constant 0.000000e+00 : f32
    %16 = vector.broadcast %cst_11 : f32 to vector<16x256xf32>
    %17 = arith.maximumf %15, %16 : vector<16x256xf32>
    %c256_i32 = arith.constant 256 : i32
    %18 = arith.muli %arg2, %c256_i32 : i32
    %c256_i32_12 = arith.constant 256 : i32
    %19 = arith.subi %c256_i32_12, %18 : i32
    %20 = tpu.iota {dimensions = array<i32: 1>} : vector<16x256xi32>
    %21 = vector.broadcast %19 : i32 to vector<16x256xi32>
    %22 = arith.cmpi slt, %20, %21 : vector<16x256xi32>
    %cst_13 = arith.constant 0.000000e+00 : f32
    %23 = vector.broadcast %cst_13 : f32 to vector<16x256xf32>
    %24 = arith.select %22, %13, %23 : vector<16x256xi1>, vector<16x256xf32>
    %25 = arith.truncf %24 : vector<16x256xf32> to vector<16x256xbf16>
    %cst_14 = arith.constant 0.000000e+00 : f32
    %26 = vector.broadcast %cst_14 : f32 to vector<16x256xf32>
    %27 = arith.select %22, %17, %26 : vector<16x256xi1>, vector<16x256xf32>
    %28 = arith.truncf %27 : vector<16x256xf32> to vector<16x256xbf16>
    %c0_15 = arith.constant 0 : index
    %c0_16 = arith.constant 0 : index
    %c0_17 = arith.constant 0 : index
    %29 = vector.load %arg5[%c0_15, %c0_16, %c0_17] : memref<2x256x512xbf16, #tpu.memory_space<vmem>>, vector<1x256x512xbf16>
    %30 = vector.shape_cast %29 : vector<1x256x512xbf16> to vector<256x512xbf16>
    %cst_18 = arith.constant dense<0.000000e+00> : vector<16x512xf32>
    %31 = tpu.matmul %25, %30, %cst_18 {dimension_numbers = #tpu.dot_dimension_numbers<[1], [0], [0], [1], [0, 0, 1, 1], [], []>} : vector<16x256xbf16>, vector<256x512xbf16>, vector<16x512xf32> -> vector<16x512xf32>
    %c1_19 = arith.constant 1 : index
    %c0_20 = arith.constant 0 : index
    %c0_21 = arith.constant 0 : index
    %32 = vector.load %arg5[%c1_19, %c0_20, %c0_21] : memref<2x256x512xbf16, #tpu.memory_space<vmem>>, vector<1x256x512xbf16>
    %33 = vector.shape_cast %32 : vector<1x256x512xbf16> to vector<256x512xbf16>
    %cst_22 = arith.constant dense<0.000000e+00> : vector<16x512xf32>
    %34 = tpu.matmul %28, %33, %cst_22 {dimension_numbers = #tpu.dot_dimension_numbers<[1], [0], [0], [1], [0, 0, 1, 1], [], []>} : vector<16x256xbf16>, vector<256x512xbf16>, vector<16x512xf32> -> vector<16x512xf32>
    %35 = arith.addf %31, %34 : vector<16x512xf32>
    %36 = arith.truncf %35 : vector<16x512xf32> to vector<16x512xbf16>
    %c0_23 = arith.constant 0 : index
    %c0_24 = arith.constant 0 : index
    %c0_25 = arith.constant 0 : index
    %37 = vector.load %arg7[%c0_23, %c0_24, %c0_25] : memref<1x16x512xbf16, #tpu.memory_space<vmem>>, vector<1x16x512xbf16>
    %38 = vector.shape_cast %37 : vector<1x16x512xbf16> to vector<16x512xbf16>
    %39 = vector.shape_cast %36 : vector<16x512xbf16> to vector<1x16x512xbf16>
    tpu.vector_store %arg7[%c0_23, %c0_24, %c0_25], %39 {strides = array<i32>} : memref<1x16x512xbf16, #tpu.memory_space<vmem>>, vector<1x16x512xbf16>,
    return
  }
  func.func @transform_0(%arg0: i32, %arg1: i32, %arg2: i32) -> (i32, i32, i32) {
    %c0_i32 = arith.constant 0 : i32
    %c0_i32_0 = arith.constant 0 : i32
    %c0_i32_1 = arith.constant 0 : i32
    return %c0_i32, %arg1, %c0_i32_0 : i32, i32, i32
  }
  func.func @transform_1(%arg0: i32, %arg1: i32, %arg2: i32) -> (i32, i32) {
    %c0_i32 = arith.constant 0 : i32
    %c0_i32_0 = arith.constant 0 : i32
    return %arg1, %c0_i32 : i32, i32
  }
  func.func @transform_2(%arg0: i32, %arg1: i32, %arg2: i32) -> (i32, i32, i32) {
    %c0_i32 = arith.constant 0 : i32
    %c0_i32_0 = arith.constant 0 : i32
    %c0_i32_1 = arith.constant 0 : i32
    %c0_i32_2 = arith.constant 0 : i32
    return %c0_i32, %c0_i32_0, %c0_i32_1 : i32, i32, i32
  }
  func.func @transform_3(%arg0: i32, %arg1: i32, %arg2: i32) -> (i32, i32, i32) {
    %c0_i32 = arith.constant 0 : i32
    %c0_i32_0 = arith.constant 0 : i32
    return %arg0, %c0_i32, %arg2 : i32, i32, i32
  }
  func.func @transform_4(%arg0: i32, %arg1: i32, %arg2: i32) -> (i32, i32, i32) {
    %c0_i32 = arith.constant 0 : i32
    return %arg0, %arg1, %arg2 : i32, i32, i32
  }
}

</mosaic_0001>

<llo_original>
// kernel: trans_basic_conv2d.1
$region0: #{trans_basic_conv2d.1}
  #allocation0 [shape = 'u32[]', space=smem, size = 0x4, offset = 0x4, fixed_abs, tag = 'smem constant byte address 0x4 - core index']
  #allocation1 [shape = 'u32[144,128]{1,0:T(1,128)}', space=vmem, size = 0x12000, scoped, tag = 'internal scratch']
  %s0 = inlined_call_operand.vmem [shape: bf16[2,16,4], index: 0, kind: input, shape index: {}]
  %s1 = inlined_call_operand.vmem [shape: f32[16,1], index: 1, kind: input, shape index: {}]
  %s2 = inlined_call_operand.vmem [shape: bf16[2,256,512], index: 2, kind: input, shape index: {}]
  %s3 = inlined_call_operand.vmem [shape: f32[2,4,256], index: 3, kind: input, shape index: {}]
  %s4 = inlined_call_operand.vmem [shape: bf16[2,16,512], index: 4, kind: output, shape index: {}]
  %s5 = sld [smem:[#allocation0]]
  $region49: #{trans_basic_conv2d.1} parent=0
    _
  %s7 = ssub.s32 1, %s5
  %s8 = scalar_select 0, %s7, %s5
  loop: start=0, step=1, limit=4
  $region2: #{trans_basic_conv2d.1} parent=0 // loop_pre_header
    _
  $region3: #{trans_basic_conv2d.1} parent=0 // loop_header
    %s10 = sphi 0, %s14
    %p11 = scmp.ge.s32.totalorder %s10, 4
    %s17 = sphi 0, %s36
    %s18 = sphi 0, %s32
    %s19 = sphi 0, %s28
    %s20 = sphi 0, %s17
    %s21 = sphi 0, %s18
    %s22 = sphi 0, %s19
    %s23 = sphi 0, %s20
    %s24 = sphi 0, %s21
    %s25 = sphi 0, %s22
    %s39 = sphi 0, %s41
    %s42 = sphi 0, %s39
    %s43 = sphi 0, %s42
    %s59 = sphi 0, %s43
    %s65 = sphi 0, %s67
    %s68 = sphi 0, %s65
    %s69 = sphi 0, %s68
    %s85 = sphi 0, %s69
    %s89 = sphi 0, %s89
    %s91 = sphi 0, %s89
    %s92 = sphi 0, %s91
    %s106 = sphi 0, %s92
    %s114 = sphi 0, %s116
    %s117 = sphi 0, %s114
    %s118 = sphi 0, %s117
    %s134 = sphi 0, %s118
    %s144 = sphi 0, %s146
    %s147 = sphi 0, %s144
    %s148 = sphi 0, %s147
    %s164 = sphi 0, %s148
  $region4: #{trans_basic_conv2d.1} parent=0 // loop_header_branch
    %13 = sbr.rel (%p11) target = $region8
  $region5: #{trans_basic_conv2d.1} parent=0 // loop_body
    %s15 = ssub.s32 %s10, 1
    %s16 = ssub.s32 %s10, 2
    %s26 = sadd.s32 1, %s19
    %p27 = scmp.ge.s32.totalorder %s26, 1
    %s28 = scalar_select %p27, 0, %s26
    %s29 = sadd.s32 1, %s18
    %s30 = scalar_select %p27, %s29, %s18
    %p31 = scmp.ge.s32.totalorder %s30, 1
    %s32 = scalar_select %p31, 0, %s30
    %s33 = sadd.s32 1, %s17
    %s34 = scalar_select %p31, %s33, %s17
    %p35 = scmp.ge.s32.totalorder %s34, 2
    %s36 = scalar_select %p35, 0, %s34
    %s37 = ssub.s32 %s18, %s32
    %p38 = scmp.eq.s32.totalorder %s37, 0
    %s40 = sadd.s32 %s39, 1
    %s41 = scalar_select %p38, %s39, %s40
    %p44 = pneg %p38
    %p45 = scmp.eq.s32.totalorder %s10, 1
    %p46 = por %p44, %p45
    %p47 = scmp.ne.s32.totalorder %s39, %s42
    %p48 = scmp.eq.s32.totalorder %s10, 0
    %p49 = por %p47, %p48
    %p50 = scmp.ne.s32.totalorder %s39, %s42
    %p51 = scmp.eq.s32.totalorder %s15, 1
    %p52 = por %p50, %p51
    %p53 = scmp.ne.s32.totalorder %s42, %s43
    %p54 = scmp.eq.s32.totalorder %s15, 0
    %p55 = por %p53, %p54
    %p56 = scmp.ne.s32.totalorder %s42, %s43
    %p57 = scmp.eq.s32.totalorder %s16, 1
    %p58 = por %p56, %p57
    %p60 = scmp.ne.s32.totalorder %s43, %s59
    %p61 = scmp.eq.s32.totalorder %s16, 0
    %p62 = por %p60, %p61
    %s63 = ssub.s32 %s18, %s32
    %p64 = scmp.eq.s32.totalorder %s63, 0
    %s66 = sadd.s32 %s65, 1
    %s67 = scalar_select %p64, %s65, %s66
    %p70 = pneg %p64
    %p71 = scmp.eq.s32.totalorder %s10, 1
    %p72 = por %p70, %p71
    %p73 = scmp.ne.s32.totalorder %s65, %s68
    %p74 = scmp.eq.s32.totalorder %s10, 0
    %p75 = por %p73, %p74
    %p76 = scmp.ne.s32.totalorder %s65, %s68
    %p77 = scmp.eq.s32.totalorder %s15, 1
    %p78 = por %p76, %p77
    %p79 = scmp.ne.s32.totalorder %s68, %s69
    %p80 = scmp.eq.s32.totalorder %s15, 0
    %p81 = por %p79, %p80
    %p82 = scmp.ne.s32.totalorder %s68, %s69
    %p83 = scmp.eq.s32.totalorder %s16, 1
    %p84 = por %p82, %p83
    %p86 = scmp.ne.s32.totalorder %s69, %s85
    %p87 = scmp.eq.s32.totalorder %s16, 0
    %p88 = por %p86, %p87
    %s90 = sadd.s32 %s89, 1
    %p93 = scmp.eq.s32.totalorder %s10, 1
    %p94 = scmp.ne.s32.totalorder %s89, %s91
    %p95 = scmp.eq.s32.totalorder %s10, 0
    %p96 = por %p94, %p95
    %p97 = scmp.ne.s32.totalorder %s89, %s91
    %p98 = scmp.eq.s32.totalorder %s15, 1
    %p99 = por %p97, %p98
    %p100 = scmp.ne.s32.totalorder %s91, %s92
    %p101 = scmp.eq.s32.totalorder %s15, 0
    %p102 = por %p100, %p101
    %p103 = scmp.ne.s32.totalorder %s91, %s92
    %p104 = scmp.eq.s32.totalorder %s16, 1
    %p105 = por %p103, %p104
    %p107 = scmp.ne.s32.totalorder %s92, %s106
    %p108 = scmp.eq.s32.totalorder %s16, 0
    %p109 = por %p107, %p108
    %s110 = ssub.s32 %s17, %s36
    %s111 = ssub.s32 %s19, %s28
    %s112 = sor.u32 %s110, %s111
    %p113 = scmp.eq.s32.totalorder %s112, 0
    %s115 = sadd.s32 %s114, 1
    %s116 = scalar_select %p113, %s114, %s115
    %p119 = pneg %p113
    %p120 = scmp.eq.s32.totalorder %s10, 1
    %p121 = por %p119, %p120
    %p122 = scmp.ne.s32.totalorder %s114, %s117
    %p123 = scmp.eq.s32.totalorder %s10, 0
    %p124 = por %p122, %p123
    %p125 = scmp.ne.s32.totalorder %s114, %s117
    %p126 = scmp.eq.s32.totalorder %s15, 1
    %p127 = por %p125, %p126
    %p128 = scmp.ne.s32.totalorder %s117, %s118
    %p129 = scmp.eq.s32.totalorder %s15, 0
    %p130 = por %p128, %p129
    %p131 = scmp.ne.s32.totalorder %s117, %s118
    %p132 = scmp.eq.s32.totalorder %s16, 1
    %p133 = por %p131, %p132
    %p135 = scmp.ne.s32.totalorder %s118, %s134
    %p136 = scmp.eq.s32.totalorder %s16, 0
    %p137 = por %p135, %p136
    %s138 = ssub.s32 %s17, %s36
    %s139 = ssub.s32 %s18, %s32
    %s140 = sor.u32 %s138, %s139
    %s141 = ssub.s32 %s19, %s28
    %s142 = sor.u32 %s140, %s141
    %p143 = scmp.eq.s32.totalorder %s142, 0
    %s145 = sadd.s32 %s144, 1
    %s146 = scalar_select %p143, %s144, %s145
    %p149 = pneg %p143
    %p150 = scmp.eq.s32.totalorder %s10, 1
    %p151 = por %p149, %p150
    %p152 = scmp.ne.s32.totalorder %s144, %s147
    %p153 = scmp.eq.s32.totalorder %s10, 0
    %p154 = por %p152, %p153
    %p155 = scmp.ne.s32.totalorder %s144, %s147
    %p156 = scmp.eq.s32.totalorder %s15, 1
    %p157 = por %p155, %p156
    %p158 = scmp.ne.s32.totalorder %s147, %s148
    %p159 = scmp.eq.s32.totalorder %s15, 0
    %p160 = por %p158, %p159
    %p161 = scmp.ne.s32.totalorder %s147, %s148
    %p162 = scmp.eq.s32.totalorder %s16, 1
    %p163 = por %p161, %p162
    %p165 = scmp.ne.s32.totalorder %s148, %s164
    %p166 = scmp.eq.s32.totalorder %s16, 0
    %p167 = por %p165, %p166
    %p168 = scmp.le.s32.totalorder 1, %s10
    %p169 = scmp.lt.s32.totalorder %s10, 3
    %p170 = pnand %p168, %p169
    %p171 = pneg %p170
    // Predicated region
    $region9: #{trans_basic_conv2d.1} parent=5 // pred_check
      _
    $region10: #{trans_basic_conv2d.1} parent=5 // pred_check_branch
      %173 = sbr.rel (%p170) target = $region12
    $region11: #{trans_basic_conv2d.1} parent=5 // pred_region
      %s174 = ssub.s32 %s10, 1
      // Predicated region
      $region13: #{trans_basic_conv2d.1} parent=11 // pred_check
        %p175 = pneg %p55
      $region14: #{trans_basic_conv2d.1} parent=11 // pred_check_branch
        %177 = sbr.rel (%p175) target = $region16
      $region15: #{trans_basic_conv2d.1} parent=11 // pred_region
        %s178 = smul.u32 2, %s21
        %p179 = scmp.lt.s32.totalorder %s178, 1
        %s180 = scalar_select %p179, %s178, 1
        %s181 = smul.addr %s180, 4
        %s182 = scalar_lea.vmem %s0, %s181
        %s183 = smul.u32 2, %s21
      $region16: #{trans_basic_conv2d.1} parent=11 // pred_fallthru
        _
      // Predicated region
      $region17: #{trans_basic_conv2d.1} parent=11 // pred_check
        %p184 = pneg %p81
      $region18: #{trans_basic_conv2d.1} parent=11 // pred_check_branch
        %186 = sbr.rel (%p184) target = $region20
      $region19: #{trans_basic_conv2d.1} parent=11 // pred_region
        %s187 = smul.u32 2, %s21
        %p188 = scmp.lt.s32.totalorder %s187, 1
        %s189 = scalar_select %p188, %s187, 1
        %s190 = smul.addr %s189, 8
        %s191 = scalar_lea.vmem %s1, %s190
        %s192 = smul.u32 2, %s21
      $region20: #{trans_basic_conv2d.1} parent=11 // pred_fallthru
        _
      // Predicated region
      $region21: #{trans_basic_conv2d.1} parent=11 // pred_check
        %p193 = pneg %p102
      $region22: #{trans_basic_conv2d.1} parent=11 // pred_check_branch
        %195 = sbr.rel (%p193) target = $region24
      $region23: #{trans_basic_conv2d.1} parent=11 // pred_region
        _
      $region24: #{trans_basic_conv2d.1} parent=11 // pred_fallthru
        _
    $region12: #{trans_basic_conv2d.1} parent=5 // pred_fallthru
      _
    %p196 = scmp.lt.s32.totalorder %s10, 2
    // Predicated region
    $region25: #{trans_basic_conv2d.1} parent=5 // pred_check
      %p197 = pneg %p196
    $region26: #{trans_basic_conv2d.1} parent=5 // pred_check_branch
      %199 = sbr.rel (%p197) target = $region28
    $region27: #{trans_basic_conv2d.1} parent=5 // pred_region
      // Predicated region
      $region29: #{trans_basic_conv2d.1} parent=27 // pred_check
        %p200 = pneg %p124
      $region30: #{trans_basic_conv2d.1} parent=27 // pred_check_branch
        %202 = sbr.rel (%p200) target = $region32
      $region31: #{trans_basic_conv2d.1} parent=27 // pred_region
        %s203 = smul.u32 2, %s19
        %p204 = scmp.lt.s32.totalorder %s17, 1
        %s205 = scalar_select %p204, %s17, 1
        %p206 = scmp.lt.s32.totalorder %s203, 1
        %s207 = scalar_select %p206, %s203, 1
        %s208 = smul.addr %s205, 2
        %s209 = sadd.s32 %s207, %s208
        %s210 = smul.addr %s209, 4
        %s211 = scalar_lea.vmem %s3, %s210
        %s212 = smul.u32 2, %s19
      $region32: #{trans_basic_conv2d.1} parent=27 // pred_fallthru
        _
    $region28: #{trans_basic_conv2d.1} parent=5 // pred_fallthru
      _
    %p213 = scmp.le.s32.totalorder 1, %s10
    %p214 = scmp.lt.s32.totalorder %s10, 3
    %p215 = pnand %p213, %p214
    %p216 = pneg %p215
    // Predicated region
    $region33: #{trans_basic_conv2d.1} parent=5 // pred_check
      _
    $region34: #{trans_basic_conv2d.1} parent=5 // pred_check_branch
      %218 = sbr.rel (%p215) target = $region36
    $region35: #{trans_basic_conv2d.1} parent=5 // pred_region
      %s219 = ssub.s32 %s10, 1
      %s220 = smul.u32 2, %s21
      %p221 = scmp.lt.s32.totalorder %s220, 1
      %s222 = scalar_select %p221, %s220, 1
      %s223 = smul.addr %s222, 4
      %s224 = scalar_lea.vmem %s0, %s223
      %p225 = pneg %p55
      %p226 = pneg %p52
      %s227 = smul.u32 2, %s21
      %p228 = scmp.lt.s32.totalorder %s227, 1
      %s229 = scalar_select %p228, %s227, 1
      %s230 = smul.addr %s229, 8
      %s231 = scalar_lea.vmem %s1, %s230
      %p232 = pneg %p81
      %p233 = pneg %p78
      %p234 = pneg %p102
      %p235 = pneg %p99
      %s236 = smul.u32 2, %s22
      %p237 = scmp.lt.s32.totalorder %s20, 1
      %s238 = scalar_select %p237, %s20, 1
      %p239 = scmp.lt.s32.totalorder %s236, 1
      %s240 = scalar_select %p239, %s236, 1
      %s241 = smul.addr %s238, 2
      %s242 = sadd.s32 %s240, %s241
      %s243 = smul.addr %s242, 4
      %s244 = scalar_lea.vmem %s3, %s243
      %p245 = pneg %p130
      %p246 = pneg %p127
      %p247 = pneg %p160
      %p248 = pneg %p157
      %s249 = smul.u32 2, %s21
      %s250 = smul.u32 4, %s22
      %p251 = scmp.lt.s32.totalorder %s20, 1
      %s252 = scalar_select %p251, %s20, 1
      %p253 = scmp.lt.s32.totalorder %s249, 1
      %s254 = scalar_select %p253, %s249, 1
      %p255 = scmp.lt.s32.totalorder %s250, 3
      %s256 = scalar_select %p255, %s250, 3
      %s257 = smul.addr %s254, 4
      %s258 = sadd.s32 %s256, %s257
      %s259 = smul.addr %s252, 8
      %s260 = sadd.s32 %s258, %s259
      %s261 = smul.addr %s260, 4
      %s262 = scalar_lea.vmem %s4, %s261
      %s263 = smul.u32 2, %s21
      %p264 = scmp.lt.s32.totalorder %s263, 1
      %s265 = scalar_select %p264, %s263, 1
      %s266 = smul.addr %s265, 4
      %s267 = scalar_lea.vmem %s0, %s266
      %s268 = smul.u32 2, %s21
      %s269 = smul.u32 2, %s21
      %p270 = scmp.lt.s32.totalorder %s269, 1
      %s271 = scalar_select %p270, %s269, 1
      %s272 = smul.addr %s271, 8
      %s273 = scalar_lea.vmem %s1, %s272
      %s274 = smul.u32 2, %s21
      %s275 = smul.u32 2, %s22
      %p276 = scmp.lt.s32.totalorder %s20, 1
      %s277 = scalar_select %p276, %s20, 1
      %p278 = scmp.lt.s32.totalorder %s275, 1
      %s279 = scalar_select %p278, %s275, 1
      %s280 = smul.addr %s277, 2
      %s281 = sadd.s32 %s279, %s280
      %s282 = smul.addr %s281, 4
      %s283 = scalar_lea.vmem %s3, %s282
      %s284 = smul.u32 2, %s22
      %s285 = smul.u32 2, %s21
      %s286 = smul.u32 4, %s22
      %p287 = scmp.lt.s32.totalorder %s20, 1
      %s288 = scalar_select %p287, %s20, 1
      %p289 = scmp.lt.s32.totalorder %s285, 1
      %s290 = scalar_select %p289, %s285, 1
      %p291 = scmp.lt.s32.totalorder %s286, 3
      %s292 = scalar_select %p291, %s286, 3
      %s293 = smul.addr %s290, 4
      %s294 = sadd.s32 %s292, %s293
      %s295 = smul.addr %s288, 8
      %s296 = sadd.s32 %s294, %s295
      %s297 = smul.addr %s296, 4
      %s298 = scalar_lea.vmem %s4, %s297
      %s299 = smul.u32 2, %s21
      %s300 = smul.u32 4, %s22
      %v302 = vld [vmem:[%s283] sm:$0xff]
      %v304 = vcombine.high %v302, %v302
      %v306 = vpack.c.bf16 %v302, %v302
      %v307 = vpack.c.bf16 %v304, %v304
      %v308 = vld [vmem:[%s267] sm:$0xf]
      %v309 = vld [vmem:[%s267 + $0x4] sm:$0xf]
      %s310 = scalar_lea.vmem %s267, 8
      %v311 = vld [vmem:[%s310] sm:$0xf]
      %v312 = vld [vmem:[%s310 + $0x4] sm:$0xf]
      %v313 = vld [vmem:[%s273] sm:$0xff]
      %v314 = vld [vmem:[%s273 + $0x8] sm:$0xff]
      %316 = vset.pattern.permute.xlu0 0
      %317 = vperm.xlu0 %316, %v313
      %v318 = vpop.permute.xlu0 %317
      %321 = vset.pattern.permute.xlu0 0
      %322 = vperm.xlu0 %321, %v314
      %v323 = vpop.permute.xlu0 %322
      %v327 = vunpack.c.l.b16 %v308
      %v328 = vunpack.c.l.b16 %v309
      %v329 = vpack.c.b16 %v328, %v327
      %vm330 = vcmask 31744
      %v332 = vsel %vm330, %v329, 0
      %vm334 = vcmask 1041408
      %v336 = vsel %vm334, %v306, 0
      %v339 = vsel %vm334, %v307, 0
      %341 = vmatprep.subr.bf16.mxu0 %v339
      %342 = vmatpush1.bf16.msra.mxu0 %v336
      %343 = vmatprep.subr.bf16.mxu0 0
      %344 = vmatpush1.bf16.msra.mxu0 0
      %345 = vmatprep.subr.bf16.mxu0 0
      %346 = vmatpush1.bf16.msra.mxu0 0
      %347 = vmatprep.subr.bf16.mxu0 0
      %348 = vmatpush1.bf16.msra.mxu0 0
      %349 = vmatprep.subr.bf16.mxu0 0
      %350 = vmatpush1.bf16.msra.mxu0 0
      %351 = vmatprep.subr.bf16.mxu0 0
      %352 = vmatpush1.bf16.msra.mxu0 0
      %353 = vmatprep.subr.bf16.mxu0 0
      %354 = vmatpush1.bf16.msra.mxu0 0
      %355 = vmatprep.subr.bf16.mxu0 0
      %356 = vmatpush1.bf16.msra.mxu0 0
      %357 = vmatprep.subr.bf16.mxu0 0
      %358 = vmatpush1.bf16.msra.mxu0 0
      %359 = vmatprep.subr.bf16.mxu0 0
      %360 = vmatpush1.bf16.msra.mxu0 0
      %361 = vmatprep.subr.bf16.mxu0 0
      %362 = vmatpush1.bf16.msra.mxu0 0
      %363 = vmatprep.subr.bf16.mxu0 0
      %364 = vmatpush1.bf16.msra.mxu0 0
      %365 = vmatprep.subr.bf16.mxu0 0
      %366 = vmatpush1.bf16.msra.mxu0 0
      %367 = vmatprep.subr.bf16.mxu0 0
      %368 = vmatpush1.bf16.msra.mxu0 0
      %369 = vmatprep.subr.bf16.mxu0 0
      %370 = vmatpush1.bf16.msra.mxu0 0
      %371 = vmatprep.subr.bf16.mxu0 0
      %372 = vmatpush1.bf16.msra.mxu0 0
      %373 = vmatprep.mubr.bf16.mxu0 0
      %374 = vmatmul.mubr.bf16.gmra.mrb[0].mxu0 %v332
      %v375 = vpop.f32.mrb[0].mxu0
      %v376 = vadd.f32 %v318, %v375
      %v377 = vpop.f32.mrb[0].mxu0
      %v378 = vadd.f32 %v318, %v377
      %v379 = vpop.f32.mrb[0].mxu0
      %v380 = vadd.f32 %v323, %v379
      %v381 = vpop.f32.mrb[0].mxu0
      %v382 = vadd.f32 %v323, %v381
      %383 = vdwg.mxu0
      %v384 = vmax.f32 %v376, 0.0
      %v385 = vmax.f32 %v378, 0.0
      %v386 = vmax.f32 %v380, 0.0
      %v387 = vmax.f32 %v382, 0.0
      %v390 = vunpack.c.l.b16 %v311
      %v391 = vunpack.c.l.b16 %v312
      %v392 = vpack.c.b16 %v391, %v390
      %v394 = vsel %vm330, %v392, 0
      %396 = vmatprep.subr.bf16.mxu0 %v339
      %397 = vmatpush1.bf16.msra.mxu0 %v336
      %398 = vmatprep.subr.bf16.mxu0 0
      %399 = vmatpush1.bf16.msra.mxu0 0
      %400 = vmatprep.subr.bf16.mxu0 0
      %401 = vmatpush1.bf16.msra.mxu0 0
      %402 = vmatprep.subr.bf16.mxu0 0
      %403 = vmatpush1.bf16.msra.mxu0 0
      %404 = vmatprep.subr.bf16.mxu0 0
      %405 = vmatpush1.bf16.msra.mxu0 0
      %406 = vmatprep.subr.bf16.mxu0 0
      %407 = vmatpush1.bf16.msra.mxu0 0
      %408 = vmatprep.subr.bf16.mxu0 0
      %409 = vmatpush1.bf16.msra.mxu0 0
      %410 = vmatprep.subr.bf16.mxu0 0
      %411 = vmatpush1.bf16.msra.mxu0 0
      %412 = vmatprep.subr.bf16.mxu0 0
      %413 = vmatpush1.bf16.msra.mxu0 0
      %414 = vmatprep.subr.bf16.mxu0 0
      %415 = vmatpush1.bf16.msra.mxu0 0
      %416 = vmatprep.subr.bf16.mxu0 0
      %417 = vmatpush1.bf16.msra.mxu0 0
      %418 = vmatprep.subr.bf16.mxu0 0
      %419 = vmatpush1.bf16.msra.mxu0 0
      %420 = vmatprep.subr.bf16.mxu0 0
      %421 = vmatpush1.bf16.msra.mxu0 0
      %422 = vmatprep.subr.bf16.mxu0 0
      %423 = vmatpush1.bf16.msra.mxu0 0
      %424 = vmatprep.subr.bf16.mxu0 0
      %425 = vmatpush1.bf16.msra.mxu0 0
      %426 = vmatprep.subr.bf16.mxu0 0
      %427 = vmatpush1.bf16.msra.mxu0 0
      %428 = vmatprep.mubr.bf16.mxu0 0
      %429 = vmatmul.mubr.bf16.gmra.mrb[0].mxu0 %v394
      %v430 = vpop.f32.mrb[0].mxu0
      %v431 = vadd.f32 %v318, %v430
      %v432 = vpop.f32.mrb[0].mxu0
      %v433 = vadd.f32 %v318, %v432
      %v434 = vpop.f32.mrb[0].mxu0
      %v435 = vadd.f32 %v323, %v434
      %v436 = vpop.f32.mrb[0].mxu0
      %v437 = vadd.f32 %v323, %v436
      %438 = vdwg.mxu0
      %v439 = vmax.f32 %v431, 0.0
      %v440 = vmax.f32 %v433, 0.0
      %v441 = vmax.f32 %v435, 0.0
      %v442 = vmax.f32 %v437, 0.0
      %s443 = smul.u32 %s22, 256
      %s444 = ssub.s32 256, %s443
      %v445 = vlaneseq
      %v446 = vand.u32 %v445, 127
      %v447 = vadd.s32 %v446, 128
      %v448 = vstv %s444
      %vm449 = vcmp.lt.s32.totalorder %v446, %v448
      %vm450 = vcmp.lt.s32.totalorder %v447, %v448
      %v451 = vsel %vm449, %v384, 0.0
      %v452 = vsel %vm450, %v385, 0.0
      %v453 = vsel %vm449, %v386, 0.0
      %v454 = vsel %vm450, %v387, 0.0
      %v455 = vpack.c.bf16 %v453, %v451
      %v456 = vpack.c.bf16 %v454, %v452
      %v457 = vsel %vm449, %v439, 0.0
      %v458 = vsel %vm450, %v440, 0.0
      %v459 = vsel %vm449, %v441, 0.0
      %v460 = vsel %vm450, %v442, 0.0
      %v461 = vpack.c.bf16 %v459, %v457
      %v462 = vpack.c.bf16 %v460, %v458
      %v463 = vld [vmem:[%s2] sm:$0xff]
      %v464 = vld [vmem:[%s2 + $0x8] sm:$0xff]
      %v465 = vld [vmem:[%s2 + $0x10] sm:$0xff]
      %v466 = vld [vmem:[%s2 + $0x18] sm:$0xff]
      %v467 = vld [vmem:[%s2 + $0x20] sm:$0xff]
      %v468 = vld [vmem:[%s2 + $0x28] sm:$0xff]
      %v469 = vld [vmem:[%s2 + $0x30] sm:$0xff]
      %v470 = vld [vmem:[%s2 + $0x38] sm:$0xff]
      %v471 = vld [vmem:[%s2 + $0x40] sm:$0xff]
      %v472 = vld [vmem:[%s2 + $0x48] sm:$0xff]
      %v473 = vld [vmem:[%s2 + $0x50] sm:$0xff]
      %v474 = vld [vmem:[%s2 + $0x58] sm:$0xff]
      %v475 = vld [vmem:[%s2 + $0x60] sm:$0xff]
      %v476 = vld [vmem:[%s2 + $0x68] sm:$0xff]
      %v477 = vld [vmem:[%s2 + $0x70] sm:$0xff]
      %v478 = vld [vmem:[%s2 + $0x78] sm:$0xff]
      %v479 = vld [vmem:[%s2 + $0x80] sm:$0xff]
      %v480 = vld [vmem:[%s2 + $0x88] sm:$0xff]
      %v481 = vld [vmem:[%s2 + $0x90] sm:$0xff]
      %v482 = vld [vmem:[%s2 + $0x98] sm:$0xff]
      %v483 = vld [vmem:[%s2 + $0xa0] sm:$0xff]
      %v484 = vld [vmem:[%s2 + $0xa8] sm:$0xff]
      %v485 = vld [vmem:[%s2 + $0xb0] sm:$0xff]
      %v486 = vld [vmem:[%s2 + $0xb8] sm:$0xff]
      %v487 = vld [vmem:[%s2 + $0xc0] sm:$0xff]
      %v488 = vld [vmem:[%s2 + $0xc8] sm:$0xff]
      %v489 = vld [vmem:[%s2 + $0xd0] sm:$0xff]
      %v490 = vld [vmem:[%s2 + $0xd8] sm:$0xff]
      %v491 = vld [vmem:[%s2 + $0xe0] sm:$0xff]
      %v492 = vld [vmem:[%s2 + $0xe8] sm:$0xff]
      %v493 = vld [vmem:[%s2 + $0xf0] sm:$0xff]
      %v494 = vld [vmem:[%s2 + $0xf8] sm:$0xff]
      %v495 = vld [vmem:[%s2 + $0x100] sm:$0xff]
      %v496 = vld [vmem:[%s2 + $0x108] sm:$0xff]
      %v497 = vld [vmem:[%s2 + $0x110] sm:$0xff]
      %v498 = vld [vmem:[%s2 + $0x118] sm:$0xff]
      %v499 = vld [vmem:[%s2 + $0x120] sm:$0xff]
      %v500 = vld [vmem:[%s2 + $0x128] sm:$0xff]
      %v501 = vld [vmem:[%s2 + $0x130] sm:$0xff]
      %v502 = vld [vmem:[%s2 + $0x138] sm:$0xff]
      %v503 = vld [vmem:[%s2 + $0x140] sm:$0xff]
      %v504 = vld [vmem:[%s2 + $0x148] sm:$0xff]
      %v505 = vld [vmem:[%s2 + $0x150] sm:$0xff]
      %v506 = vld [vmem:[%s2 + $0x158] sm:$0xff]
      %v507 = vld [vmem:[%s2 + $0x160] sm:$0xff]
      %v508 = vld [vmem:[%s2 + $0x168] sm:$0xff]
      %v509 = vld [vmem:[%s2 + $0x170] sm:$0xff]
      %v510 = vld [vmem:[%s2 + $0x178] sm:$0xff]
      %v511 = vld [vmem:[%s2 + $0x180] sm:$0xff]
      %v512 = vld [vmem:[%s2 + $0x188] sm:$0xff]
      %v513 = vld [vmem:[%s2 + $0x190] sm:$0xff]
      %v514 = vld [vmem:[%s2 + $0x198] sm:$0xff]
      %v515 = vld [vmem:[%s2 + $0x1a0] sm:$0xff]
      %v516 = vld [vmem:[%s2 + $0x1a8] sm:$0xff]
      %v517 = vld [vmem:[%s2 + $0x1b0] sm:$0xff]
      %v518 = vld [vmem:[%s2 + $0x1b8] sm:$0xff]
      %v519 = vld [vmem:[%s2 + $0x1c0] sm:$0xff]
      %v520 = vld [vmem:[%s2 + $0x1c8] sm:$0xff]
      %v521 = vld [vmem:[%s2 + $0x1d0] sm:$0xff]
      %v522 = vld [vmem:[%s2 + $0x1d8] sm:$0xff]
      %v523 = vld [vmem:[%s2 + $0x1e0] sm:$0xff]
      %v524 = vld [vmem:[%s2 + $0x1e8] sm:$0xff]
      %v525 = vld [vmem:[%s2 + $0x1f0] sm:$0xff]
      %v526 = vld [vmem:[%s2 + $0x1f8] sm:$0xff]
      %s527 = scalar_lea.vmem %s2, 512
      %v528 = vld [vmem:[%s527] sm:$0xff]
      %v529 = vld [vmem:[%s527 + $0x8] sm:$0xff]
      %v530 = vld [vmem:[%s527 + $0x10] sm:$0xff]
      %v531 = vld [vmem:[%s527 + $0x18] sm:$0xff]
      %v532 = vld [vmem:[%s527 + $0x20] sm:$0xff]
      %v533 = vld [vmem:[%s527 + $0x28] sm:$0xff]
      %v534 = vld [vmem:[%s527 + $0x30] sm:$0xff]
      %v535 = vld [vmem:[%s527 + $0x38] sm:$0xff]
      %v536 = vld [vmem:[%s527 + $0x40] sm:$0xff]
      %v537 = vld [vmem:[%s527 + $0x48] sm:$0xff]
      %v538 = vld [vmem:[%s527 + $0x50] sm:$0xff]
      %v539 = vld [vmem:[%s527 + $0x58] sm:$0xff]
      %v540 = vld [vmem:[%s527 + $0x60] sm:$0xff]
      %v541 = vld [vmem:[%s527 + $0x68] sm:$0xff]
      %v542 = vld [vmem:[%s527 + $0x70] sm:$0xff]
      %v543 = vld [vmem:[%s527 + $0x78] sm:$0xff]
      %v544 = vld [vmem:[%s527 + $0x80] sm:$0xff]
      %v545 = vld [vmem:[%s527 + $0x88] sm:$0xff]
      %v546 = vld [vmem:[%s527 + $0x90] sm:$0xff]
      %v547 = vld [vmem:[%s527 + $0x98] sm:$0xff]
      %v548 = vld [vmem:[%s527 + $0xa0] sm:$0xff]
      %v549 = vld [vmem:[%s527 + $0xa8] sm:$0xff]
      %v550 = vld [vmem:[%s527 + $0xb0] sm:$0xff]
      %v551 = vld [vmem:[%s527 + $0xb8] sm:$0xff]
      %v552 = vld [vmem:[%s527 + $0xc0] sm:$0xff]
      %v553 = vld [vmem:[%s527 + $0xc8] sm:$0xff]
      %v554 = vld [vmem:[%s527 + $0xd0] sm:$0xff]
      %v555 = vld [vmem:[%s527 + $0xd8] sm:$0xff]
      %v556 = vld [vmem:[%s527 + $0xe0] sm:$0xff]
      %v557 = vld [vmem:[%s527 + $0xe8] sm:$0xff]
      %v558 = vld [vmem:[%s527 + $0xf0] sm:$0xff]
      %v559 = vld [vmem:[%s527 + $0xf8] sm:$0xff]
      %v560 = vld [vmem:[%s527 + $0x100] sm:$0xff]
      %v561 = vld [vmem:[%s527 + $0x108] sm:$0xff]
      %v562 = vld [vmem:[%s527 + $0x110] sm:$0xff]
      %v563 = vld [vmem:[%s527 + $0x118] sm:$0xff]
      %v564 = vld [vmem:[%s527 + $0x120] sm:$0xff]
      %v565 = vld [vmem:[%s527 + $0x128] sm:$0xff]
      %v566 = vld [vmem:[%s527 + $0x130] sm:$0xff]
      %v567 = vld [vmem:[%s527 + $0x138] sm:$0xff]
      %v568 = vld [vmem:[%s527 + $0x140] sm:$0xff]
      %v569 = vld [vmem:[%s527 + $0x148] sm:$0xff]
      %v570 = vld [vmem:[%s527 + $0x150] sm:$0xff]
      %v571 = vld [vmem:[%s527 + $0x158] sm:$0xff]
      %v572 = vld [vmem:[%s527 + $0x160] sm:$0xff]
      %v573 = vld [vmem:[%s527 + $0x168] sm:$0xff]
      %v574 = vld [vmem:[%s527 + $0x170] sm:$0xff]
      %v575 = vld [vmem:[%s527 + $0x178] sm:$0xff]
      %v576 = vld [vmem:[%s527 + $0x180] sm:$0xff]
      %v577 = vld [vmem:[%s527 + $0x188] sm:$0xff]
      %v578 = vld [vmem:[%s527 + $0x190] sm:$0xff]
      %v579 = vld [vmem:[%s527 + $0x198] sm:$0xff]
      %v580 = vld [vmem:[%s527 + $0x1a0] sm:$0xff]
      %v581 = vld [vmem:[%s527 + $0x1a8] sm:$0xff]
      %v582 = vld [vmem:[%s527 + $0x1b0] sm:$0xff]
      %v583 = vld [vmem:[%s527 + $0x1b8] sm:$0xff]
      %v584 = vld [vmem:[%s527 + $0x1c0] sm:$0xff]
      %v585 = vld [vmem:[%s527 + $0x1c8] sm:$0xff]
      %v586 = vld [vmem:[%s527 + $0x1d0] sm:$0xff]
      %v587 = vld [vmem:[%s527 + $0x1d8] sm:$0xff]
      %v588 = vld [vmem:[%s527 + $0x1e0] sm:$0xff]
      %v589 = vld [vmem:[%s527 + $0x1e8] sm:$0xff]
      %v590 = vld [vmem:[%s527 + $0x1f0] sm:$0xff]
      %v591 = vld [vmem:[%s527 + $0x1f8] sm:$0xff]
      %v656 = vunpack.c.l.b16 %v528
      %v657 = vunpack.c.h.b16 %v528
      %v658 = vunpack.c.l.b16 %v529
      %v659 = vunpack.c.h.b16 %v529
      %v660 = vunpack.c.l.b16 %v530
      %v661 = vunpack.c.h.b16 %v530
      %v662 = vunpack.c.l.b16 %v531
      %v663 = vunpack.c.h.b16 %v531
      %v664 = vunpack.c.l.b16 %v532
      %v665 = vunpack.c.h.b16 %v532
      %v666 = vunpack.c.l.b16 %v533
      %v667 = vunpack.c.h.b16 %v533
      %v668 = vunpack.c.l.b16 %v534
      %v669 = vunpack.c.h.b16 %v534
      %v670 = vunpack.c.l.b16 %v535
      %v671 = vunpack.c.h.b16 %v535
      %v672 = vunpack.c.l.b16 %v536
      %v673 = vunpack.c.h.b16 %v536
      %v674 = vunpack.c.l.b16 %v537
      %v675 = vunpack.c.h.b16 %v537
      %v676 = vunpack.c.l.b16 %v538
      %v677 = vunpack.c.h.b16 %v538
      %v678 = vunpack.c.l.b16 %v539
      %v679 = vunpack.c.h.b16 %v539
      %v680 = vunpack.c.l.b16 %v540
      %v681 = vunpack.c.h.b16 %v540
      %v682 = vunpack.c.l.b16 %v541
      %v683 = vunpack.c.h.b16 %v541
      %v684 = vunpack.c.l.b16 %v542
      %v685 = vunpack.c.h.b16 %v542
      %v686 = vunpack.c.l.b16 %v543
      %v687 = vunpack.c.h.b16 %v543
      %v688 = vunpack.c.l.b16 %v544
      %v689 = vunpack.c.h.b16 %v544
      %v690 = vunpack.c.l.b16 %v545
      %v691 = vunpack.c.h.b16 %v545
      %v692 = vunpack.c.l.b16 %v546
      %v693 = vunpack.c.h.b16 %v546
      %v694 = vunpack.c.l.b16 %v547
      %v695 = vunpack.c.h.b16 %v547
      %v696 = vunpack.c.l.b16 %v548
      %v697 = vunpack.c.h.b16 %v548
      %v698 = vunpack.c.l.b16 %v549
      %v699 = vunpack.c.h.b16 %v549
      %v700 = vunpack.c.l.b16 %v550
      %v701 = vunpack.c.h.b16 %v550
      %v702 = vunpack.c.l.b16 %v551
      %v703 = vunpack.c.h.b16 %v551
      %v704 = vunpack.c.l.b16 %v552
      %v705 = vunpack.c.h.b16 %v552
      %v706 = vunpack.c.l.b16 %v553
      %v707 = vunpack.c.h.b16 %v553
      %v708 = vunpack.c.l.b16 %v554
      %v709 = vunpack.c.h.b16 %v554
      %v710 = vunpack.c.l.b16 %v555
      %v711 = vunpack.c.h.b16 %v555
      %v712 = vunpack.c.l.b16 %v556
      %v713 = vunpack.c.h.b16 %v556
      %v714 = vunpack.c.l.b16 %v557
      %v715 = vunpack.c.h.b16 %v557
      %v716 = vunpack.c.l.b16 %v558
      %v717 = vunpack.c.h.b16 %v558
      %v718 = vunpack.c.l.b16 %v559
      %v719 = vunpack.c.h.b16 %v559
      %v720 = vunpack.c.l.b16 %v560
      %v721 = vunpack.c.h.b16 %v560
      %v722 = vunpack.c.l.b16 %v561
      %v723 = vunpack.c.h.b16 %v561
      %v724 = vunpack.c.l.b16 %v562
      %v725 = vunpack.c.h.b16 %v562
      %v726 = vunpack.c.l.b16 %v563
      %v727 = vunpack.c.h.b16 %v563
      %v728 = vunpack.c.l.b16 %v564
      %v729 = vunpack.c.h.b16 %v564
      %v730 = vunpack.c.l.b16 %v565
      %v731 = vunpack.c.h.b16 %v565
      %v732 = vunpack.c.l.b16 %v566
      %v733 = vunpack.c.h.b16 %v566
      %v734 = vunpack.c.l.b16 %v567
      %v735 = vunpack.c.h.b16 %v567
      %v736 = vunpack.c.l.b16 %v568
      %v737 = vunpack.c.h.b16 %v568
      %v738 = vunpack.c.l.b16 %v569
      %v739 = vunpack.c.h.b16 %v569
      %v740 = vunpack.c.l.b16 %v570
      %v741 = vunpack.c.h.b16 %v570
      %v742 = vunpack.c.l.b16 %v571
      %v743 = vunpack.c.h.b16 %v571
      %v744 = vunpack.c.l.b16 %v572
      %v745 = vunpack.c.h.b16 %v572
      %v746 = vunpack.c.l.b16 %v573
      %v747 = vunpack.c.h.b16 %v573
      %v748 = vunpack.c.l.b16 %v574
      %v749 = vunpack.c.h.b16 %v574
      %v750 = vunpack.c.l.b16 %v575
      %v751 = vunpack.c.h.b16 %v575
      %v752 = vunpack.c.l.b16 %v576
      %v753 = vunpack.c.h.b16 %v576
      %v754 = vunpack.c.l.b16 %v577
      %v755 = vunpack.c.h.b16 %v577
      %v756 = vunpack.c.l.b16 %v578
      %v757 = vunpack.c.h.b16 %v578
      %v758 = vunpack.c.l.b16 %v579
      %v759 = vunpack.c.h.b16 %v579
      %v760 = vunpack.c.l.b16 %v580
      %v761 = vunpack.c.h.b16 %v580
      %v762 = vunpack.c.l.b16 %v581
      %v763 = vunpack.c.h.b16 %v581
      %v764 = vunpack.c.l.b16 %v582
      %v765 = vunpack.c.h.b16 %v582
      %v766 = vunpack.c.l.b16 %v583
      %v767 = vunpack.c.h.b16 %v583
      %v768 = vunpack.c.l.b16 %v584
      %v769 = vunpack.c.h.b16 %v584
      %v770 = vunpack.c.l.b16 %v585
      %v771 = vunpack.c.h.b16 %v585
      %v772 = vunpack.c.l.b16 %v586
      %v773 = vunpack.c.h.b16 %v586
      %v774 = vunpack.c.l.b16 %v587
      %v775 = vunpack.c.h.b16 %v587
      %v776 = vunpack.c.l.b16 %v588
      %v777 = vunpack.c.h.b16 %v588
      %v778 = vunpack.c.l.b16 %v589
      %v779 = vunpack.c.h.b16 %v589
      %v780 = vunpack.c.l.b16 %v590
      %v781 = vunpack.c.h.b16 %v590
      %v782 = vunpack.c.l.b16 %v591
      %v783 = vunpack.c.h.b16 %v591
      %v784 = vpack.c.b16 %v660, %v656
      %v785 = vpack.c.b16 %v661, %v657
      %v786 = vpack.c.b16 %v662, %v658
      %v787 = vpack.c.b16 %v663, %v659
      %v788 = vpack.c.b16 %v668, %v664
      %v789 = vpack.c.b16 %v669, %v665
      %v790 = vpack.c.b16 %v670, %v666
      %v791 = vpack.c.b16 %v671, %v667
      %v792 = vpack.c.b16 %v676, %v672
      %v793 = vpack.c.b16 %v677, %v673
      %v794 = vpack.c.b16 %v678, %v674
      %v795 = vpack.c.b16 %v679, %v675
      %v796 = vpack.c.b16 %v684, %v680
      %v797 = vpack.c.b16 %v685, %v681
      %v798 = vpack.c.b16 %v686, %v682
      %v799 = vpack.c.b16 %v687, %v683
      %v800 = vpack.c.b16 %v692, %v688
      %v801 = vpack.c.b16 %v693, %v689
      %v802 = vpack.c.b16 %v694, %v690
      %v803 = vpack.c.b16 %v695, %v691
      %v804 = vpack.c.b16 %v700, %v696
      %v805 = vpack.c.b16 %v701, %v697
      %v806 = vpack.c.b16 %v702, %v698
      %v807 = vpack.c.b16 %v703, %v699
      %v808 = vpack.c.b16 %v708, %v704
      %v809 = vpack.c.b16 %v709, %v705
      %v810 = vpack.c.b16 %v710, %v706
      %v811 = vpack.c.b16 %v711, %v707
      %v812 = vpack.c.b16 %v716, %v712
      %v813 = vpack.c.b16 %v717, %v713
      %v814 = vpack.c.b16 %v718, %v714
      %v815 = vpack.c.b16 %v719, %v715
      %v816 = vpack.c.b16 %v724, %v720
      %v817 = vpack.c.b16 %v725, %v721
      %v818 = vpack.c.b16 %v726, %v722
      %v819 = vpack.c.b16 %v727, %v723
      %v820 = vpack.c.b16 %v732, %v728
      %v821 = vpack.c.b16 %v733, %v729
      %v822 = vpack.c.b16 %v734, %v730
      %v823 = vpack.c.b16 %v735, %v731
      %v824 = vpack.c.b16 %v740, %v736
      %v825 = vpack.c.b16 %v741, %v737
      %v826 = vpack.c.b16 %v742, %v738
      %v827 = vpack.c.b16 %v743, %v739
      %v828 = vpack.c.b16 %v748, %v744
      %v829 = vpack.c.b16 %v749, %v745
      %v830 = vpack.c.b16 %v750, %v746
      %v831 = vpack.c.b16 %v751, %v747
      %v832 = vpack.c.b16 %v756, %v752
      %v833 = vpack.c.b16 %v757, %v753
      %v834 = vpack.c.b16 %v758, %v754
      %v835 = vpack.c.b16 %v759, %v755
      %v836 = vpack.c.b16 %v764, %v760
      %v837 = vpack.c.b16 %v765, %v761
      %v838 = vpack.c.b16 %v766, %v762
      %v839 = vpack.c.b16 %v767, %v763
      %v840 = vpack.c.b16 %v772, %v768
      %v841 = vpack.c.b16 %v773, %v769
      %v842 = vpack.c.b16 %v774, %v770
      %v843 = vpack.c.b16 %v775, %v771
      %v844 = vpack.c.b16 %v780, %v776
      %v845 = vpack.c.b16 %v781, %v777
      %v846 = vpack.c.b16 %v782, %v778
      %v847 = vpack.c.b16 %v783, %v779
      %912 = vmatprep.subr.bf16.mxu0 %v785
      %913 = vmatpush1.bf16.msra.mxu0 %v784
      %914 = vmatprep.subr.bf16.mxu0 %v789
      %915 = vmatpush1.bf16.msra.mxu0 %v788
      %916 = vmatprep.subr.bf16.mxu0 %v793
      %917 = vmatpush1.bf16.msra.mxu0 %v792
      %918 = vmatprep.subr.bf16.mxu0 %v797
      %919 = vmatpush1.bf16.msra.mxu0 %v796
      %920 = vmatprep.subr.bf16.mxu0 %v801
      %921 = vmatpush1.bf16.msra.mxu0 %v800
      %922 = vmatprep.subr.bf16.mxu0 %v805
      %923 = vmatpush1.bf16.msra.mxu0 %v804
      %924 = vmatprep.subr.bf16.mxu0 %v809
      %925 = vmatpush1.bf16.msra.mxu0 %v808
      %926 = vmatprep.subr.bf16.mxu0 %v813
      %927 = vmatpush1.bf16.msra.mxu0 %v812
      %928 = vmatprep.subr.bf16.mxu0 %v817
      %929 = vmatpush1.bf16.msra.mxu0 %v816
      %930 = vmatprep.subr.bf16.mxu0 %v821
      %931 = vmatpush1.bf16.msra.mxu0 %v820
      %932 = vmatprep.subr.bf16.mxu0 %v825
      %933 = vmatpush1.bf16.msra.mxu0 %v824
      %934 = vmatprep.subr.bf16.mxu0 %v829
      %935 = vmatpush1.bf16.msra.mxu0 %v828
      %936 = vmatprep.subr.bf16.mxu0 %v833
      %937 = vmatpush1.bf16.msra.mxu0 %v832
      %938 = vmatprep.subr.bf16.mxu0 %v837
      %939 = vmatpush1.bf16.msra.mxu0 %v836
      %940 = vmatprep.subr.bf16.mxu0 %v841
      %941 = vmatpush1.bf16.msra.mxu0 %v840
      %942 = vmatprep.subr.bf16.mxu0 %v845
      %943 = vmatpush1.bf16.msra.mxu0 %v844
      %944 = vmatprep.mubr.bf16.mxu0 %v462
      %945 = vmatmul.mubr.bf16.gmra.mrb[0].mxu0 %v461
      %v946 = vpop.f32.mrb[0].mxu0
      %v947 = vadd.f32 0.0, %v946
      %v948 = vpop.f32.mrb[0].mxu0
      %v949 = vadd.f32 0.0, %v948
      %v950 = vpop.f32.mrb[0].mxu0
      %v951 = vadd.f32 0.0, %v950
      %v952 = vpop.f32.mrb[0].mxu0
      %v953 = vadd.f32 0.0, %v952
      %954 = vdwg.mxu0
      %955 = vmatprep.subr.bf16.mxu0 %v787
      %956 = vmatpush1.bf16.msra.mxu0 %v786
      %957 = vmatprep.subr.bf16.mxu0 %v791
      %958 = vmatpush1.bf16.msra.mxu0 %v790
      %959 = vmatprep.subr.bf16.mxu0 %v795
      %960 = vmatpush1.bf16.msra.mxu0 %v794
      %961 = vmatprep.subr.bf16.mxu0 %v799
      %962 = vmatpush1.bf16.msra.mxu0 %v798
      %963 = vmatprep.subr.bf16.mxu0 %v803
      %964 = vmatpush1.bf16.msra.mxu0 %v802
      %965 = vmatprep.subr.bf16.mxu0 %v807
      %966 = vmatpush1.bf16.msra.mxu0 %v806
      %967 = vmatprep.subr.bf16.mxu0 %v811
      %968 = vmatpush1.bf16.msra.mxu0 %v810
      %969 = vmatprep.subr.bf16.mxu0 %v815
      %970 = vmatpush1.bf16.msra.mxu0 %v814
      %971 = vmatprep.subr.bf16.mxu0 %v819
      %972 = vmatpush1.bf16.msra.mxu0 %v818
      %973 = vmatprep.subr.bf16.mxu0 %v823
      %974 = vmatpush1.bf16.msra.mxu0 %v822
      %975 = vmatprep.subr.bf16.mxu0 %v827
      %976 = vmatpush1.bf16.msra.mxu0 %v826
      %977 = vmatprep.subr.bf16.mxu0 %v831
      %978 = vmatpush1.bf16.msra.mxu0 %v830
      %979 = vmatprep.subr.bf16.mxu0 %v835
      %980 = vmatpush1.bf16.msra.mxu0 %v834
      %981 = vmatprep.subr.bf16.mxu0 %v839
      %982 = vmatpush1.bf16.msra.mxu0 %v838
      %983 = vmatprep.subr.bf16.mxu0 %v843
      %984 = vmatpush1.bf16.msra.mxu0 %v842
      %985 = vmatprep.subr.bf16.mxu0 %v847
      %986 = vmatpush1.bf16.msra.mxu0 %v846
      %987 = vmatprep.mubr.bf16.mxu0 %v462
      %988 = vmatmul.mubr.bf16.gmra.mrb[0].mxu0 %v461
      %v989 = vpop.f32.mrb[0].mxu0
      %v990 = vadd.f32 0.0, %v989
      %v991 = vpop.f32.mrb[0].mxu0
      %v992 = vadd.f32 0.0, %v991
      %v993 = vpop.f32.mrb[0].mxu0
      %v994 = vadd.f32 0.0, %v993
      %v995 = vpop.f32.mrb[0].mxu0
      %v996 = vadd.f32 0.0, %v995
      %997 = vdwg.mxu0
      %v1062 = vunpack.c.l.b16 %v463
      %v1063 = vunpack.c.h.b16 %v463
      %v1064 = vunpack.c.l.b16 %v464
      %v1065 = vunpack.c.h.b16 %v464
      %v1066 = vunpack.c.l.b16 %v465
      %v1067 = vunpack.c.h.b16 %v465
      %v1068 = vunpack.c.l.b16 %v466
      %v1069 = vunpack.c.h.b16 %v466
      %v1070 = vunpack.c.l.b16 %v467
      %v1071 = vunpack.c.h.b16 %v467
      %v1072 = vunpack.c.l.b16 %v468
      %v1073 = vunpack.c.h.b16 %v468
      %v1074 = vunpack.c.l.b16 %v469
      %v1075 = vunpack.c.h.b16 %v469
      %v1076 = vunpack.c.l.b16 %v470
      %v1077 = vunpack.c.h.b16 %v470
      %v1078 = vunpack.c.l.b16 %v471
      %v1079 = vunpack.c.h.b16 %v471
      %v1080 = vunpack.c.l.b16 %v472
      %v1081 = vunpack.c.h.b16 %v472
      %v1082 = vunpack.c.l.b16 %v473
      %v1083 = vunpack.c.h.b16 %v473
      %v1084 = vunpack.c.l.b16 %v474
      %v1085 = vunpack.c.h.b16 %v474
      %v1086 = vunpack.c.l.b16 %v475
      %v1087 = vunpack.c.h.b16 %v475
      %v1088 = vunpack.c.l.b16 %v476
      %v1089 = vunpack.c.h.b16 %v476
      %v1090 = vunpack.c.l.b16 %v477
      %v1091 = vunpack.c.h.b16 %v477
      %v1092 = vunpack.c.l.b16 %v478
      %v1093 = vunpack.c.h.b16 %v478
      %v1094 = vunpack.c.l.b16 %v479
      %v1095 = vunpack.c.h.b16 %v479
      %v1096 = vunpack.c.l.b16 %v480
      %v1097 = vunpack.c.h.b16 %v480
      %v1098 = vunpack.c.l.b16 %v481
      %v1099 = vunpack.c.h.b16 %v481
      %v1100 = vunpack.c.l.b16 %v482
      %v1101 = vunpack.c.h.b16 %v482
      %v1102 = vunpack.c.l.b16 %v483
      %v1103 = vunpack.c.h.b16 %v483
      %v1104 = vunpack.c.l.b16 %v484
      %v1105 = vunpack.c.h.b16 %v484
      %v1106 = vunpack.c.l.b16 %v485
      %v1107 = vunpack.c.h.b16 %v485
      %v1108 = vunpack.c.l.b16 %v486
      %v1109 = vunpack.c.h.b16 %v486
      %v1110 = vunpack.c.l.b16 %v487
      %v1111 = vunpack.c.h.b16 %v487
      %v1112 = vunpack.c.l.b16 %v488
      %v1113 = vunpack.c.h.b16 %v488
      %v1114 = vunpack.c.l.b16 %v489
      %v1115 = vunpack.c.h.b16 %v489
      %v1116 = vunpack.c.l.b16 %v490
      %v1117 = vunpack.c.h.b16 %v490
      %v1118 = vunpack.c.l.b16 %v491
      %v1119 = vunpack.c.h.b16 %v491
      %v1120 = vunpack.c.l.b16 %v492
      %v1121 = vunpack.c.h.b16 %v492
      %v1122 = vunpack.c.l.b16 %v493
      %v1123 = vunpack.c.h.b16 %v493
      %v1124 = vunpack.c.l.b16 %v494
      %v1125 = vunpack.c.h.b16 %v494
      %v1126 = vunpack.c.l.b16 %v495
      %v1127 = vunpack.c.h.b16 %v495
      %v1128 = vunpack.c.l.b16 %v496
      %v1129 = vunpack.c.h.b16 %v496
      %v1130 = vunpack.c.l.b16 %v497
      %v1131 = vunpack.c.h.b16 %v497
      %v1132 = vunpack.c.l.b16 %v498
      %v1133 = vunpack.c.h.b16 %v498
      %v1134 = vunpack.c.l.b16 %v499
      %v1135 = vunpack.c.h.b16 %v499
      %v1136 = vunpack.c.l.b16 %v500
      %v1137 = vunpack.c.h.b16 %v500
      %v1138 = vunpack.c.l.b16 %v501
      %v1139 = vunpack.c.h.b16 %v501
      %v1140 = vunpack.c.l.b16 %v502
      %v1141 = vunpack.c.h.b16 %v502
      %v1142 = vunpack.c.l.b16 %v503
      %v1143 = vunpack.c.h.b16 %v503
      %v1144 = vunpack.c.l.b16 %v504
      %v1145 = vunpack.c.h.b16 %v504
      %v1146 = vunpack.c.l.b16 %v505
      %v1147 = vunpack.c.h.b16 %v505
      %v1148 = vunpack.c.l.b16 %v506
      %v1149 = vunpack.c.h.b16 %v506
      %v1150 = vunpack.c.l.b16 %v507
      %v1151 = vunpack.c.h.b16 %v507
      %v1152 = vunpack.c.l.b16 %v508
      %v1153 = vunpack.c.h.b16 %v508
      %v1154 = vunpack.c.l.b16 %v509
      %v1155 = vunpack.c.h.b16 %v509
      %v1156 = vunpack.c.l.b16 %v510
      %v1157 = vunpack.c.h.b16 %v510
      %v1158 = vunpack.c.l.b16 %v511
      %v1159 = vunpack.c.h.b16 %v511
      %v1160 = vunpack.c.l.b16 %v512
      %v1161 = vunpack.c.h.b16 %v512
      %v1162 = vunpack.c.l.b16 %v513
      %v1163 = vunpack.c.h.b16 %v513
      %v1164 = vunpack.c.l.b16 %v514
      %v1165 = vunpack.c.h.b16 %v514
      %v1166 = vunpack.c.l.b16 %v515
      %v1167 = vunpack.c.h.b16 %v515
      %v1168 = vunpack.c.l.b16 %v516
      %v1169 = vunpack.c.h.b16 %v516
      %v1170 = vunpack.c.l.b16 %v517
      %v1171 = vunpack.c.h.b16 %v517
      %v1172 = vunpack.c.l.b16 %v518
      %v1173 = vunpack.c.h.b16 %v518
      %v1174 = vunpack.c.l.b16 %v519
      %v1175 = vunpack.c.h.b16 %v519
      %v1176 = vunpack.c.l.b16 %v520
      %v1177 = vunpack.c.h.b16 %v520
      %v1178 = vunpack.c.l.b16 %v521
      %v1179 = vunpack.c.h.b16 %v521
      %v1180 = vunpack.c.l.b16 %v522
      %v1181 = vunpack.c.h.b16 %v522
      %v1182 = vunpack.c.l.b16 %v523
      %v1183 = vunpack.c.h.b16 %v523
      %v1184 = vunpack.c.l.b16 %v524
      %v1185 = vunpack.c.h.b16 %v524
      %v1186 = vunpack.c.l.b16 %v525
      %v1187 = vunpack.c.h.b16 %v525
      %v1188 = vunpack.c.l.b16 %v526
      %v1189 = vunpack.c.h.b16 %v526
      %v1190 = vpack.c.b16 %v1066, %v1062
      %v1191 = vpack.c.b16 %v1067, %v1063
      %v1192 = vpack.c.b16 %v1068, %v1064
      %v1193 = vpack.c.b16 %v1069, %v1065
      %v1194 = vpack.c.b16 %v1074, %v1070
      %v1195 = vpack.c.b16 %v1075, %v1071
      %v1196 = vpack.c.b16 %v1076, %v1072
      %v1197 = vpack.c.b16 %v1077, %v1073
      %v1198 = vpack.c.b16 %v1082, %v1078
      %v1199 = vpack.c.b16 %v1083, %v1079
      %v1200 = vpack.c.b16 %v1084, %v1080
      %v1201 = vpack.c.b16 %v1085, %v1081
      %v1202 = vpack.c.b16 %v1090, %v1086
      %v1203 = vpack.c.b16 %v1091, %v1087
      %v1204 = vpack.c.b16 %v1092, %v1088
      %v1205 = vpack.c.b16 %v1093, %v1089
      %v1206 = vpack.c.b16 %v1098, %v1094
      %v1207 = vpack.c.b16 %v1099, %v1095
      %v1208 = vpack.c.b16 %v1100, %v1096
      %v1209 = vpack.c.b16 %v1101, %v1097
      %v1210 = vpack.c.b16 %v1106, %v1102
      %v1211 = vpack.c.b16 %v1107, %v1103
      %v1212 = vpack.c.b16 %v1108, %v1104
      %v1213 = vpack.c.b16 %v1109, %v1105
      %v1214 = vpack.c.b16 %v1114, %v1110
      %v1215 = vpack.c.b16 %v1115, %v1111
      %v1216 = vpack.c.b16 %v1116, %v1112
      %v1217 = vpack.c.b16 %v1117, %v1113
      %v1218 = vpack.c.b16 %v1122, %v1118
      %v1219 = vpack.c.b16 %v1123, %v1119
      %v1220 = vpack.c.b16 %v1124, %v1120
      %v1221 = vpack.c.b16 %v1125, %v1121
      %v1222 = vpack.c.b16 %v1130, %v1126
      %v1223 = vpack.c.b16 %v1131, %v1127
      %v1224 = vpack.c.b16 %v1132, %v1128
      %v1225 = vpack.c.b16 %v1133, %v1129
      %v1226 = vpack.c.b16 %v1138, %v1134
      %v1227 = vpack.c.b16 %v1139, %v1135
      %v1228 = vpack.c.b16 %v1140, %v1136
      %v1229 = vpack.c.b16 %v1141, %v1137
      %v1230 = vpack.c.b16 %v1146, %v1142
      %v1231 = vpack.c.b16 %v1147, %v1143
      %v1232 = vpack.c.b16 %v1148, %v1144
      %v1233 = vpack.c.b16 %v1149, %v1145
      %v1234 = vpack.c.b16 %v1154, %v1150
      %v1235 = vpack.c.b16 %v1155, %v1151
      %v1236 = vpack.c.b16 %v1156, %v1152
      %v1237 = vpack.c.b16 %v1157, %v1153
      %v1238 = vpack.c.b16 %v1162, %v1158
      %v1239 = vpack.c.b16 %v1163, %v1159
      %v1240 = vpack.c.b16 %v1164, %v1160
      %v1241 = vpack.c.b16 %v1165, %v1161
      %v1242 = vpack.c.b16 %v1170, %v1166
      %v1243 = vpack.c.b16 %v1171, %v1167
      %v1244 = vpack.c.b16 %v1172, %v1168
      %v1245 = vpack.c.b16 %v1173, %v1169
      %v1246 = vpack.c.b16 %v1178, %v1174
      %v1247 = vpack.c.b16 %v1179, %v1175
      %v1248 = vpack.c.b16 %v1180, %v1176
      %v1249 = vpack.c.b16 %v1181, %v1177
      %v1250 = vpack.c.b16 %v1186, %v1182
      %v1251 = vpack.c.b16 %v1187, %v1183
      %v1252 = vpack.c.b16 %v1188, %v1184
      %v1253 = vpack.c.b16 %v1189, %v1185
      %1318 = vmatprep.subr.bf16.mxu0 %v1191
      %1319 = vmatpush1.bf16.msra.mxu0 %v1190
      %1320 = vmatprep.subr.bf16.mxu0 %v1195
      %1321 = vmatpush1.bf16.msra.mxu0 %v1194
      %1322 = vmatprep.subr.bf16.mxu0 %v1199
      %1323 = vmatpush1.bf16.msra.mxu0 %v1198
      %1324 = vmatprep.subr.bf16.mxu0 %v1203
      %1325 = vmatpush1.bf16.msra.mxu0 %v1202
      %1326 = vmatprep.subr.bf16.mxu0 %v1207
      %1327 = vmatpush1.bf16.msra.mxu0 %v1206
      %1328 = vmatprep.subr.bf16.mxu0 %v1211
      %1329 = vmatpush1.bf16.msra.mxu0 %v1210
      %1330 = vmatprep.subr.bf16.mxu0 %v1215
      %1331 = vmatpush1.bf16.msra.mxu0 %v1214
      %1332 = vmatprep.subr.bf16.mxu0 %v1219
      %1333 = vmatpush1.bf16.msra.mxu0 %v1218
      %1334 = vmatprep.subr.bf16.mxu0 %v1223
      %1335 = vmatpush1.bf16.msra.mxu0 %v1222
      %1336 = vmatprep.subr.bf16.mxu0 %v1227
      %1337 = vmatpush1.bf16.msra.mxu0 %v1226
      %1338 = vmatprep.subr.bf16.mxu0 %v1231
      %1339 = vmatpush1.bf16.msra.mxu0 %v1230
      %1340 = vmatprep.subr.bf16.mxu0 %v1235
      %1341 = vmatpush1.bf16.msra.mxu0 %v1234
      %1342 = vmatprep.subr.bf16.mxu0 %v1239
      %1343 = vmatpush1.bf16.msra.mxu0 %v1238
      %1344 = vmatprep.subr.bf16.mxu0 %v1243
      %1345 = vmatpush1.bf16.msra.mxu0 %v1242
      %1346 = vmatprep.subr.bf16.mxu0 %v1247
      %1347 = vmatpush1.bf16.msra.mxu0 %v1246
      %1348 = vmatprep.subr.bf16.mxu0 %v1251
      %1349 = vmatpush1.bf16.msra.mxu0 %v1250
      %1350 = vmatprep.mubr.bf16.mxu0 %v456
      %1351 = vmatmul.mubr.bf16.gmra.mrb[0].mxu0 %v455
      %v1352 = vpop.f32.mrb[0].mxu0
      %v1353 = vadd.f32 %v947, %v1352
      %v1354 = vpop.f32.mrb[0].mxu0
      %v1355 = vadd.f32 %v949, %v1354
      %v1356 = vpop.f32.mrb[0].mxu0
      %v1357 = vadd.f32 %v951, %v1356
      %v1358 = vpop.f32.mrb[0].mxu0
      %v1359 = vadd.f32 %v953, %v1358
      %1360 = vdwg.mxu0
      %1361 = vmatprep.subr.bf16.mxu0 %v1193
      %1362 = vmatpush1.bf16.msra.mxu0 %v1192
      %1363 = vmatprep.subr.bf16.mxu0 %v1197
      %1364 = vmatpush1.bf16.msra.mxu0 %v1196
      %1365 = vmatprep.subr.bf16.mxu0 %v1201
      %1366 = vmatpush1.bf16.msra.mxu0 %v1200
      %1367 = vmatprep.subr.bf16.mxu0 %v1205
      %1368 = vmatpush1.bf16.msra.mxu0 %v1204
      %1369 = vmatprep.subr.bf16.mxu0 %v1209
      %1370 = vmatpush1.bf16.msra.mxu0 %v1208
      %1371 = vmatprep.subr.bf16.mxu0 %v1213
      %1372 = vmatpush1.bf16.msra.mxu0 %v1212
      %1373 = vmatprep.subr.bf16.mxu0 %v1217
      %1374 = vmatpush1.bf16.msra.mxu0 %v1216
      %1375 = vmatprep.subr.bf16.mxu0 %v1221
      %1376 = vmatpush1.bf16.msra.mxu0 %v1220
      %1377 = vmatprep.subr.bf16.mxu0 %v1225
      %1378 = vmatpush1.bf16.msra.mxu0 %v1224
      %1379 = vmatprep.subr.bf16.mxu0 %v1229
      %1380 = vmatpush1.bf16.msra.mxu0 %v1228
      %1381 = vmatprep.subr.bf16.mxu0 %v1233
      %1382 = vmatpush1.bf16.msra.mxu0 %v1232
      %1383 = vmatprep.subr.bf16.mxu0 %v1237
      %1384 = vmatpush1.bf16.msra.mxu0 %v1236
      %1385 = vmatprep.subr.bf16.mxu0 %v1241
      %1386 = vmatpush1.bf16.msra.mxu0 %v1240
      %1387 = vmatprep.subr.bf16.mxu0 %v1245
      %1388 = vmatpush1.bf16.msra.mxu0 %v1244
      %1389 = vmatprep.subr.bf16.mxu0 %v1249
      %1390 = vmatpush1.bf16.msra.mxu0 %v1248
      %1391 = vmatprep.subr.bf16.mxu0 %v1253
      %1392 = vmatpush1.bf16.msra.mxu0 %v1252
      %1393 = vmatprep.mubr.bf16.mxu0 %v456
      %1394 = vmatmul.mubr.bf16.gmra.mrb[0].mxu0 %v455
      %v1395 = vpop.f32.mrb[0].mxu0
      %v1396 = vadd.f32 %v990, %v1395
      %v1397 = vpop.f32.mrb[0].mxu0
      %v1398 = vadd.f32 %v992, %v1397
      %v1399 = vpop.f32.mrb[0].mxu0
      %v1400 = vadd.f32 %v994, %v1399
      %v1401 = vpop.f32.mrb[0].mxu0
      %v1402 = vadd.f32 %v996, %v1401
      %1403 = vdwg.mxu0
      %v1404 = vpack.c.bf16 %v1357, %v1353
      %v1405 = vpack.c.bf16 %v1359, %v1355
      %v1406 = vpack.c.bf16 %v1400, %v1396
      %v1407 = vpack.c.bf16 %v1402, %v1398
      %v1412 = vunpack.c.l.b16 %v1404
      %v1413 = vunpack.c.l.b16 %v1405
      %v1414 = vunpack.c.l.b16 %v1406
      %v1415 = vunpack.c.l.b16 %v1407
      %v1416 = vunpack.c.h.b16 %v1404
      %v1417 = vunpack.c.h.b16 %v1405
      %v1418 = vunpack.c.h.b16 %v1406
      %v1419 = vunpack.c.h.b16 %v1407
      %v1420 = vpack.c.b16 %v1413, %v1412
      %v1421 = vpack.c.b16 %v1415, %v1414
      %v1422 = vpack.c.b16 %v1417, %v1416
      %v1423 = vpack.c.b16 %v1419, %v1418
      %1428 = vst [vmem:[%s298] sm:$0xff] %v1420
      %1429 = vst [vmem:[%s298 + $0x8] sm:$0xff] %v1421
      %1430 = vst [vmem:[%s298 + $0x10] sm:$0xff] %v1422
      %1431 = vst [vmem:[%s298 + $0x18] sm:$0xff] %v1423
      %s1432 = smul.u32 2, %s21
      %s1433 = smul.u32 4, %s22
      %p1434 = scmp.lt.s32.totalorder %s20, 1
      %s1435 = scalar_select %p1434, %s20, 1
      %p1436 = scmp.lt.s32.totalorder %s1432, 1
      %s1437 = scalar_select %p1436, %s1432, 1
      %p1438 = scmp.lt.s32.totalorder %s1433, 3
      %s1439 = scalar_select %p1438, %s1433, 3
      %s1440 = smul.addr %s1437, 4
      %s1441 = sadd.s32 %s1439, %s1440
      %s1442 = smul.addr %s1435, 8
      %s1443 = sadd.s32 %s1441, %s1442
      %s1444 = smul.addr %s1443, 4
      %s1445 = scalar_lea.vmem %s4, %s1444
      // Predicated region
      $region37: #{trans_basic_conv2d.1} parent=35 // pred_check
        %p1446 = pneg %p157
      $region38: #{trans_basic_conv2d.1} parent=35 // pred_check_branch
        %1448 = sbr.rel (%p1446) target = $region40
      $region39: #{trans_basic_conv2d.1} parent=35 // pred_region
        %s1449 = smul.u32 2, %s21
        %s1450 = smul.u32 4, %s22
      $region40: #{trans_basic_conv2d.1} parent=35 // pred_fallthru
        _
    $region36: #{trans_basic_conv2d.1} parent=5 // pred_fallthru
      _
    %p1451 = scmp.le.s32.totalorder 2, %s10
    // Predicated region
    $region41: #{trans_basic_conv2d.1} parent=5 // pred_check
      %p1452 = pneg %p1451
    $region42: #{trans_basic_conv2d.1} parent=5 // pred_check_branch
      %1454 = sbr.rel (%p1452) target = $region44
    $region43: #{trans_basic_conv2d.1} parent=5 // pred_region
      %s1455 = ssub.s32 %s10, 2
      // Predicated region
      $region45: #{trans_basic_conv2d.1} parent=43 // pred_check
        %p1456 = pneg %p163
      $region46: #{trans_basic_conv2d.1} parent=43 // pred_check_branch
        %1458 = sbr.rel (%p1456) target = $region48
      $region47: #{trans_basic_conv2d.1} parent=43 // pred_region
        %s1459 = smul.u32 2, %s24
        %s1460 = smul.u32 4, %s25
        %p1461 = scmp.lt.s32.totalorder %s23, 1
        %s1462 = scalar_select %p1461, %s23, 1
        %p1463 = scmp.lt.s32.totalorder %s1459, 1
        %s1464 = scalar_select %p1463, %s1459, 1
        %p1465 = scmp.lt.s32.totalorder %s1460, 3
        %s1466 = scalar_select %p1465, %s1460, 3
        %s1467 = smul.addr %s1464, 4
        %s1468 = sadd.s32 %s1466, %s1467
        %s1469 = smul.addr %s1462, 8
        %s1470 = sadd.s32 %s1468, %s1469
        %s1471 = smul.addr %s1470, 4
        %s1472 = scalar_lea.vmem %s4, %s1471
      $region48: #{trans_basic_conv2d.1} parent=43 // pred_fallthru
        _
    $region44: #{trans_basic_conv2d.1} parent=5 // pred_fallthru
      _
  $region6: #{trans_basic_conv2d.1} parent=0 // loop_footer
    %s14 = sadd.s32 1, %s10
  $region7: #{trans_basic_conv2d.1} parent=0 // loop_footer_branch
    %9 = sbr.rel target = $region3
  $region8: #{trans_basic_conv2d.1} parent=0 // loop_exit
    _

</llo_original>
